<compile_context>
chip_gen: v6e
topology: v6e:2x2x1
jax: 0.10.0
libtpu: 0.0.40
codegen_flags: <defaults>
</compile_context>

<pallas_src>
import functools

import jax
import jax.numpy as jnp
from jax import lax
from jax.experimental import pallas as pl
from jax.experimental.pallas import tpu as pltpu

IGNORE_INDEX = -100          # torch.nn.CrossEntropyLoss default
_LANE = 128
_MAX_TILE = 8192             # max spatial positions (lanes) per tile
_VMEM_TILE_BUDGET = 1 << 20  # ~1 MiB per logits tile (before double-buffering)


def _make_kernel(c, tl, hw, needs_mask):
    """Build the per-(batch, spatial-tile) kernel.

    x_ref:    (C, TL)  logits tile, native dtype (classes in sublanes, positions in lanes)
    t_ref:    (1, TL)  int32 targets tile
    loss_ref: (1, 1)   partial NLL sum for this grid step
    cnt_ref:  (1, 1)   partial count of valid (non-ignored, in-bounds) positions
    """

    def kernel(x_ref, t_ref, loss_ref, cnt_ref):
        x = x_ref[...].astype(jnp.float32)          # cast on-chip (VPU, free-ish)
        t = t_ref[...]                              # (1, TL) int32

        if c <= 16:
            # Small class count (typical segmentation): unrolled, purely lane-dense
            # VPU ops; the "picked" gather is fused into the exp-sum pass.
            m = x[0:1, :]
            for k in range(1, c):
                m = jnp.maximum(m, x[k:k + 1, :])
            s = jnp.zeros_like(m)
            picked = jnp.zeros_like(m)
            for k in range(c):
                xk = x[k:k + 1, :]
                s = s + jnp.exp(xk - m)
                picked = jnp.where(t == k, xk, picked)
        else:
            # Larger class count: sublane (XLU) reductions.
            m = jnp.max(x, axis=0, keepdims=True)                      # (1, TL)
            s = jnp.sum(jnp.exp(x - m), axis=0, keepdims=True)         # (1, TL)
            row = lax.broadcasted_iota(jnp.int32, x.shape, 0)          # (C, TL)
            picked = jnp.sum(jnp.where(row == t, x, 0.0),
                             axis=0, keepdims=True)                    # (1, TL)

        valid = t != IGNORE_INDEX                                      # (1, TL)
        if needs_mask:
            # Mask the ragged tail of the last (partial) spatial tile; its VMEM
            # contents are undefined, but everything here is lane-wise so the
            # per-lane mask is sufficient.
            pos = pl.program_id(1) * tl + lax.broadcasted_iota(jnp.int32, (1, tl), 1)
            valid = jnp.logical_and(valid, pos < hw)

        nll = jnp.where(valid, (m - picked) + jnp.log(s), 0.0)         # (1, TL)

        loss_ref[...] = jnp.sum(nll, axis=-1, keepdims=True)           # (1, 1)
        cnt_ref[...] = jnp.sum(valid.astype(jnp.float32), axis=-1, keepdims=True)

    return kernel


def _choose_tile(hw, c, itemsize):
    """Largest lane tile (multiple of 128) fitting the VMEM budget."""
    hwp = ((hw + _LANE - 1) // _LANE) * _LANE
    bytes_per_col = c * max(int(itemsize), 4)       # be conservative (f32 work copy)
    by_vmem = (_VMEM_TILE_BUDGET // bytes_per_col) // _LANE * _LANE
    tl = min(_MAX_TILE, hwp, max(by_vmem, _LANE))
    return max(tl, _LANE)


def cross_entropy_2d_cls(logits, target):
    """Equivalent of cross_entropy2dCls().forward(logits, target).

    Accepts NCHW logits (N, C, H, W) with target (N, H, W), or (N, C) logits with
    target (N,). Returns a scalar float32 loss (mean over non-ignored elements).
    """
    # TODO(synk): per-class `weight` tensor path not implemented (module default is weight=None).
    if logits.ndim == 4:
        n, c, h, w = logits.shape
        hw = h * w
        x3 = logits.reshape(n, c, hw)                         # free reshape, no transpose
        t3 = target.astype(jnp.int32).reshape(n, 1, hw)
    elif logits.ndim == 2:
        n2, c = logits.shape
        # Secondary path: put classes in sublanes / samples in lanes.
        x3 = jnp.transpose(logits, (1, 0)).reshape(1, c, n2)
        t3 = target.astype(jnp.int32).reshape(1, 1, n2)
        n, hw = 1, n2
    else:
        raise ValueError(f"unsupported logits rank: {logits.ndim}")

    itemsize = jnp.dtype(logits.dtype).itemsize
    tl = _choose_tile(hw, c, itemsize)
    n_tiles = -(-hw // tl)                                    # cdiv
    needs_mask = (hw % tl) != 0

    kernel = _make_kernel(c, tl, hw, needs_mask)

    loss_parts, cnt_parts = pl.pallas_call(
        kernel,
        out_shape=(
            jax.ShapeDtypeStruct((n * n_tiles, 1, 1), jnp.float32),  # partial NLL sums
            jax.ShapeDtypeStruct((n * n_tiles, 1, 1), jnp.float32),  # partial valid counts
        ),
        grid=(n, n_tiles),
        in_specs=[
            pl.BlockSpec((None, c, tl), lambda i, j: (i, 0, j)),     # logits tile
            pl.BlockSpec((None, 1, tl), lambda i, j: (i, 0, j)),     # target tile
        ],
        out_specs=[
            pl.BlockSpec((None, 1, 1), lambda i, j: (i * n_tiles + j, 0, 0)),
            pl.BlockSpec((None, 1, 1), lambda i, j: (i * n_tiles + j, 0, 0)),
        ],
        compiler_params=pltpu.CompilerParams(
            dimension_semantics=("parallel", "parallel")),
    )(x3, t3)

    total = jnp.sum(loss_parts)
    count = jnp.sum(cnt_parts)
    return total / count


def _reference(logits, target, ignore_index=IGNORE_INDEX):
    """Pure-JAX reference (mirrors torch.nn.CrossEntropyLoss mean reduction)."""
    if logits.ndim == 4:
        n, c, h, w = logits.shape
        logits = jnp.transpose(logits, (0, 2, 3, 1)).reshape(n * h * w, c)
        target = target.reshape(n * h * w)
    logp = jax.nn.log_softmax(logits.astype(jnp.float32), axis=-1)
    t = target.astype(jnp.int32)
    valid = t != ignore_index
    t_safe = jnp.where(valid, t, 0)
    nll = -jnp.take_along_axis(logp, t_safe[:, None], axis=-1)[:, 0]
    nll = jnp.where(valid, nll, 0.0)
    return jnp.sum(nll) / jnp.sum(valid.astype(jnp.float32))


if __name__ == "__main__":
    key = jax.random.PRNGKey(0)
    k_x, k_t, k_m, k_x2, k_t2 = jax.random.split(key, 5)

    # NCHW logits + NHW integer targets, small shapes.
    N, C, H, W = 2, 4, 16, 16
    x = jax.random.normal(k_x, (N, C, H, W), dtype=jnp.float32)
    target = jax.random.randint(k_t, (N, H, W), 0, C, dtype=jnp.int32)

    loss = jax.block_until_ready(cross_entropy_2d_cls(x, target))
    ref = _reference(x, target)
    assert jnp.allclose(loss, ref, rtol=1e-5, atol=1e-5), (loss, ref)

    # Check 2: ignore_index handling (PyTorch default -100).
    drop = jax.random.bernoulli(k_m, 0.25, (N, H, W))
    target_ig = jnp.where(drop, jnp.int32(IGNORE_INDEX), target)
    loss_ig = jax.block_until_ready(cross_entropy_2d_cls(x, target_ig))
    ref_ig = _reference(x, target_ig)
    assert jnp.allclose(loss_ig, ref_ig, rtol=1e-5, atol=1e-5), (loss_ig, ref_ig)

    # Check 3: spatial extent not a multiple of 128 exercises the in-kernel
    # ragged-tail mask (no wrapper padding).
    H2, W2 = 15, 15
    x2 = jax.random.normal(k_x2, (N, C, H2, W2), dtype=jnp.float32)
    t2 = jax.random.randint(k_t2, (N, H2, W2), 0, C, dtype=jnp.int32)
    loss2 = jax.block_until_ready(cross_entropy_2d_cls(x2, t2))
    ref2 = _reference(x2, t2)
    assert jnp.allclose(loss2, ref2, rtol=1e-5, atol=1e-5), (loss2, ref2)

    print("KERNEL_OK")
</pallas_src>

<mosaic_0001>
module attributes {stable_mosaic.version = 11 : i64} {
  func.func @kernel(%arg0: i32, %arg1: i32, %arg2: memref<1x4x256xf32, #tpu.memory_space<vmem>>, %arg3: memref<1x1x256xi32, #tpu.memory_space<vmem>>, %arg4: memref<1x1x1xf32, #tpu.memory_space<vmem>>, %arg5: memref<1x1x1xf32, #tpu.memory_space<vmem>>) attributes {dimension_semantics = [#tpu.dimension_semantics<parallel>, #tpu.dimension_semantics<parallel>], iteration_bounds = array<i64: 2, 1>, scalar_prefetch = 0 : i64, scratch_operands = 0 : i64, tpu.core_type = #tpu.core_type<tc>, window_params = [{transform_indices = @transform_0, window_bounds = array<i64: 1, 4, 256>}, {transform_indices = @transform_1, window_bounds = array<i64: 1, 1, 256>}, {transform_indices = @transform_2, window_bounds = array<i64: 1, 1, 1>}, {transform_indices = @transform_3, window_bounds = array<i64: 1, 1, 1>}]} {
    %c0 = arith.constant 0 : index
    %c0_0 = arith.constant 0 : index
    %c0_1 = arith.constant 0 : index
    %0 = vector.load %arg2[%c0, %c0_0, %c0_1] : memref<1x4x256xf32, #tpu.memory_space<vmem>>, vector<1x4x256xf32>
    %1 = vector.shape_cast %0 : vector<1x4x256xf32> to vector<4x256xf32>
    %c0_2 = arith.constant 0 : index
    %c0_3 = arith.constant 0 : index
    %c0_4 = arith.constant 0 : index
    %2 = vector.load %arg3[%c0_2, %c0_3, %c0_4] : memref<1x1x256xi32, #tpu.memory_space<vmem>>, vector<1x1x256xi32>
    %3 = vector.shape_cast %2 : vector<1x1x256xi32> to vector<1x256xi32>
    %4 = vector.extract_strided_slice %1 {offsets = [0, 0], sizes = [1, 256], strides = [1, 1]} : vector<4x256xf32> to vector<1x256xf32>
    %5 = vector.extract_strided_slice %1 {offsets = [1, 0], sizes = [1, 256], strides = [1, 1]} : vector<4x256xf32> to vector<1x256xf32>
    %6 = arith.maximumf %4, %5 : vector<1x256xf32>
    %7 = vector.extract_strided_slice %1 {offsets = [2, 0], sizes = [1, 256], strides = [1, 1]} : vector<4x256xf32> to vector<1x256xf32>
    %8 = arith.maximumf %6, %7 : vector<1x256xf32>
    %9 = vector.extract_strided_slice %1 {offsets = [3, 0], sizes = [1, 256], strides = [1, 1]} : vector<4x256xf32> to vector<1x256xf32>
    %10 = arith.maximumf %8, %9 : vector<1x256xf32>
    %cst = arith.constant 0.000000e+00 : f32
    %11 = vector.broadcast %cst : f32 to vector<1x256xf32>
    %cst_5 = arith.constant 0.000000e+00 : f32
    %12 = vector.broadcast %cst_5 : f32 to vector<1x256xf32>
    %13 = vector.extract_strided_slice %1 {offsets = [0, 0], sizes = [1, 256], strides = [1, 1]} : vector<4x256xf32> to vector<1x256xf32>
    %14 = arith.subf %13, %10 : vector<1x256xf32>
    %15 = math.exp %14 : vector<1x256xf32>
    %16 = arith.addf %11, %15 : vector<1x256xf32>
    %c0_i32 = arith.constant 0 : i32
    %17 = vector.broadcast %c0_i32 : i32 to vector<1x256xi32>
    %18 = arith.cmpi eq, %3, %17 : vector<1x256xi32>
    %19 = arith.select %18, %13, %12 : vector<1x256xi1>, vector<1x256xf32>
    %20 = vector.extract_strided_slice %1 {offsets = [1, 0], sizes = [1, 256], strides = [1, 1]} : vector<4x256xf32> to vector<1x256xf32>
    %21 = arith.subf %20, %10 : vector<1x256xf32>
    %22 = math.exp %21 : vector<1x256xf32>
    %23 = arith.addf %16, %22 : vector<1x256xf32>
    %c1_i32 = arith.constant 1 : i32
    %24 = vector.broadcast %c1_i32 : i32 to vector<1x256xi32>
    %25 = arith.cmpi eq, %3, %24 : vector<1x256xi32>
    %26 = arith.select %25, %20, %19 : vector<1x256xi1>, vector<1x256xf32>
    %27 = vector.extract_strided_slice %1 {offsets = [2, 0], sizes = [1, 256], strides = [1, 1]} : vector<4x256xf32> to vector<1x256xf32>
    %28 = arith.subf %27, %10 : vector<1x256xf32>
    %29 = math.exp %28 : vector<1x256xf32>
    %30 = arith.addf %23, %29 : vector<1x256xf32>
    %c2_i32 = arith.constant 2 : i32
    %31 = vector.broadcast %c2_i32 : i32 to vector<1x256xi32>
    %32 = arith.cmpi eq, %3, %31 : vector<1x256xi32>
    %33 = arith.select %32, %27, %26 : vector<1x256xi1>, vector<1x256xf32>
    %34 = vector.extract_strided_slice %1 {offsets = [3, 0], sizes = [1, 256], strides = [1, 1]} : vector<4x256xf32> to vector<1x256xf32>
    %35 = arith.subf %34, %10 : vector<1x256xf32>
    %36 = math.exp %35 : vector<1x256xf32>
    %37 = arith.addf %30, %36 : vector<1x256xf32>
    %c3_i32 = arith.constant 3 : i32
    %38 = vector.broadcast %c3_i32 : i32 to vector<1x256xi32>
    %39 = arith.cmpi eq, %3, %38 : vector<1x256xi32>
    %40 = arith.select %39, %34, %33 : vector<1x256xi1>, vector<1x256xf32>
    %c-100_i32 = arith.constant -100 : i32
    %41 = vector.broadcast %c-100_i32 : i32 to vector<1x256xi32>
    %42 = arith.cmpi ne, %3, %41 : vector<1x256xi32>
    %43 = arith.subf %10, %40 : vector<1x256xf32>
    %44 = math.log %37 : vector<1x256xf32>
    %45 = arith.addf %43, %44 : vector<1x256xf32>
    %cst_6 = arith.constant 0.000000e+00 : f32
    %46 = vector.broadcast %cst_6 : f32 to vector<1x256xf32>
    %47 = arith.select %42, %45, %46 : vector<1x256xi1>, vector<1x256xf32>
    %cst_7 = arith.constant dense<0.000000e+00> : vector<1xf32>
    %48 = vector.multi_reduction <add>, %47, %cst_7 [1] : vector<1x256xf32> to vector<1xf32>
    %49 = vector.shape_cast %48 : vector<1xf32> to vector<1x1xf32>
    %c0_8 = arith.constant 0 : index
    %c0_9 = arith.constant 0 : index
    %c0_10 = arith.constant 0 : index
    %50 = vector.load %arg4[%c0_8, %c0_9, %c0_10] : memref<1x1x1xf32, #tpu.memory_space<vmem>>, vector<1x1x1xf32>
    %51 = vector.shape_cast %50 : vector<1x1x1xf32> to vector<1x1xf32>
    %52 = vector.shape_cast %49 : vector<1x1xf32> to vector<1x1x1xf32>
    tpu.vector_store %arg4[%c0_8, %c0_9, %c0_10], %52 {strides = array<i32>} : memref<1x1x1xf32, #tpu.memory_space<vmem>>, vector<1x1x1xf32>,
    %53 = arith.extui %42 : vector<1x256xi1> to vector<1x256xi32>
    %54 = arith.sitofp %53 : vector<1x256xi32> to vector<1x256xf32>
    %cst_11 = arith.constant dense<0.000000e+00> : vector<1xf32>
    %55 = vector.multi_reduction <add>, %54, %cst_11 [1] : vector<1x256xf32> to vector<1xf32>
    %56 = vector.shape_cast %55 : vector<1xf32> to vector<1x1xf32>
    %c0_12 = arith.constant 0 : index
    %c0_13 = arith.constant 0 : index
    %c0_14 = arith.constant 0 : index
    %57 = vector.load %arg5[%c0_12, %c0_13, %c0_14] : memref<1x1x1xf32, #tpu.memory_space<vmem>>, vector<1x1x1xf32>
    %58 = vector.shape_cast %57 : vector<1x1x1xf32> to vector<1x1xf32>
    %59 = vector.shape_cast %56 : vector<1x1xf32> to vector<1x1x1xf32>
    tpu.vector_store %arg5[%c0_12, %c0_13, %c0_14], %59 {strides = array<i32>} : memref<1x1x1xf32, #tpu.memory_space<vmem>>, vector<1x1x1xf32>,
    return
  }
  func.func @transform_0(%arg0: i32, %arg1: i32) -> (i32, i32, i32) {
    %c0_i32 = arith.constant 0 : i32
    %c0_i32_0 = arith.constant 0 : i32
    return %arg0, %c0_i32, %arg1 : i32, i32, i32
  }
  func.func @transform_1(%arg0: i32, %arg1: i32) -> (i32, i32, i32) {
    %c0_i32 = arith.constant 0 : i32
    %c0_i32_0 = arith.constant 0 : i32
    return %arg0, %c0_i32, %arg1 : i32, i32, i32
  }
  func.func @transform_2(%arg0: i32, %arg1: i32) -> (i32, i32, i32) {
    %c1_i32 = arith.constant 1 : i32
    %0 = arith.muli %arg0, %c1_i32 : i32
    %1 = arith.addi %0, %arg1 : i32
    %c0_i32 = arith.constant 0 : i32
    %c0_i32_0 = arith.constant 0 : i32
    %c0_i32_1 = arith.constant 0 : i32
    return %1, %c0_i32, %c0_i32_0 : i32, i32, i32
  }
  func.func @transform_3(%arg0: i32, %arg1: i32) -> (i32, i32, i32) {
    %c1_i32 = arith.constant 1 : i32
    %0 = arith.muli %arg0, %c1_i32 : i32
    %1 = arith.addi %0, %arg1 : i32
    %c0_i32 = arith.constant 0 : i32
    %c0_i32_0 = arith.constant 0 : i32
    %c0_i32_1 = arith.constant 0 : i32
    return %1, %c0_i32, %c0_i32_0 : i32, i32, i32
  }
}

</mosaic_0001>

<llo_original>
// kernel: tpu_custom_call.1
$region0: #{tpu_custom_call.1}
  #allocation0 [shape = 'u32[]', space=smem, size = 0x4, offset = 0x4, fixed_abs, tag = 'smem constant byte address 0x4 - core index']
  #allocation1 [shape = 'u32[144,128]{1,0:T(1,128)}', space=vmem, size = 0x12000, scoped, tag = 'internal scratch']
  %s0 = inlined_call_operand.hbm [shape: f32[2,4,256], index: 0, kind: input, shape index: {}]
  %s1 = inlined_call_operand.hbm [shape: s32[2,1,256], index: 1, kind: input, shape index: {}]
  %s2 = inlined_call_operand.vmem [shape: f32[2,1,1], index: 2, kind: output, shape index: {0}]
  %s3 = inlined_call_operand.vmem [shape: f32[2,1,1], index: 3, kind: output, shape index: {1}]
  %4 = xla_tuple %s2, %s3
  %s5 = sld [smem:[#allocation0]]
  $region57: #{tpu_custom_call.1} parent=0
    _
  %s7 = ssub.s32 1, %s5
  %s8 = scalar_select 0, %s7, %s5
  $region1: #{tpu_custom_call.1} parent=0
    #allocation2 [shape = 'u8[8192]{0}', space=vmem, size = 0x2000, scoped, tag = 'input window, operand 0']
    #allocation3 [shape = 's32[2]{0}', space=sflag, size = 0x8, scoped, tag = 'scoped memory for tpu_custom_call.1']
    #allocation4 [shape = 'u8[2048]{0}', space=vmem, size = 0x800, scoped, tag = 'input window, operand 1']
    #allocation5 [shape = 's32[2]{0}', space=sflag, size = 0x8, scoped, tag = 'scoped memory for tpu_custom_call.1']
    %9 = vsyncpa [#allocation3], 0
    %s10 = scalar_lea.sflag [#allocation3], 1
    %11 = vsyncpa %s10, 0
    %12 = vsyncpa [#allocation5], 0
    %s13 = scalar_lea.sflag [#allocation5], 1
    %14 = vsyncpa %s13, 0
    loop: start=0, step=1, limit=4
    $region2: #{tpu_custom_call.1} parent=1 // loop_pre_header
      _
    $region3: #{tpu_custom_call.1} parent=1 // loop_header
      %s16 = sphi 0, %s20
      %p17 = scmp.ge.s32.totalorder %s16, 4
      %s23 = sphi 0, %s35
      %s24 = sphi 0, %s31
      %s25 = sphi 0, %s23
      %s26 = sphi 0, %s24
      %s27 = sphi 0, %s25
      %s28 = sphi 0, %s26
      %s40 = sphi 0, %s42
      %s43 = sphi 0, %s40
      %s44 = sphi 0, %s43
      %s60 = sphi 0, %s44
      %s68 = sphi 0, %s70
      %s71 = sphi 0, %s68
      %s72 = sphi 0, %s71
      %s88 = sphi 0, %s72
      %s96 = sphi 0, %s98
      %s99 = sphi 0, %s96
      %s100 = sphi 0, %s99
      %s116 = sphi 0, %s100
      %s124 = sphi 0, %s126
      %s127 = sphi 0, %s124
      %s128 = sphi 0, %s127
      %s144 = sphi 0, %s128
    $region4: #{tpu_custom_call.1} parent=1 // loop_header_branch
      %19 = sbr.rel (%p17) target = $region8
    $region5: #{tpu_custom_call.1} parent=1 // loop_body
      %s21 = ssub.s32 %s16, 1
      %s22 = ssub.s32 %s16, 2
      %s29 = sadd.s32 1, %s24
      %p30 = scmp.ge.s32.totalorder %s29, 1
      %s31 = scalar_select %p30, 0, %s29
      %s32 = sadd.s32 1, %s23
      %s33 = scalar_select %p30, %s32, %s23
      %p34 = scmp.ge.s32.totalorder %s33, 2
      %s35 = scalar_select %p34, 0, %s33
      %s36 = ssub.s32 %s23, %s35
      %s37 = ssub.s32 %s24, %s31
      %s38 = sor.u32 %s36, %s37
      %p39 = scmp.eq.s32.totalorder %s38, 0
      %s41 = sadd.s32 %s40, 1
      %s42 = scalar_select %p39, %s40, %s41
      %p45 = pneg %p39
      %p46 = scmp.eq.s32.totalorder %s16, 1
      %p47 = por %p45, %p46
      %p48 = scmp.ne.s32.totalorder %s40, %s43
      %p49 = scmp.eq.s32.totalorder %s16, 0
      %p50 = por %p48, %p49
      %p51 = scmp.ne.s32.totalorder %s40, %s43
      %p52 = scmp.eq.s32.totalorder %s21, 1
      %p53 = por %p51, %p52
      %p54 = scmp.ne.s32.totalorder %s43, %s44
      %p55 = scmp.eq.s32.totalorder %s21, 0
      %p56 = por %p54, %p55
      %p57 = scmp.ne.s32.totalorder %s43, %s44
      %p58 = scmp.eq.s32.totalorder %s22, 1
      %p59 = por %p57, %p58
      %p61 = scmp.ne.s32.totalorder %s44, %s60
      %p62 = scmp.eq.s32.totalorder %s22, 0
      %p63 = por %p61, %p62
      %s64 = ssub.s32 %s23, %s35
      %s65 = ssub.s32 %s24, %s31
      %s66 = sor.u32 %s64, %s65
      %p67 = scmp.eq.s32.totalorder %s66, 0
      %s69 = sadd.s32 %s68, 1
      %s70 = scalar_select %p67, %s68, %s69
      %p73 = pneg %p67
      %p74 = scmp.eq.s32.totalorder %s16, 1
      %p75 = por %p73, %p74
      %p76 = scmp.ne.s32.totalorder %s68, %s71
      %p77 = scmp.eq.s32.totalorder %s16, 0
      %p78 = por %p76, %p77
      %p79 = scmp.ne.s32.totalorder %s68, %s71
      %p80 = scmp.eq.s32.totalorder %s21, 1
      %p81 = por %p79, %p80
      %p82 = scmp.ne.s32.totalorder %s71, %s72
      %p83 = scmp.eq.s32.totalorder %s21, 0
      %p84 = por %p82, %p83
      %p85 = scmp.ne.s32.totalorder %s71, %s72
      %p86 = scmp.eq.s32.totalorder %s22, 1
      %p87 = por %p85, %p86
      %p89 = scmp.ne.s32.totalorder %s72, %s88
      %p90 = scmp.eq.s32.totalorder %s22, 0
      %p91 = por %p89, %p90
      %s92 = sadd.s32 %s23, %s24
      %s93 = sadd.s32 %s35, %s31
      %s94 = ssub.s32 %s92, %s93
      %p95 = scmp.eq.s32.totalorder %s94, 0
      %s97 = sadd.s32 %s96, 1
      %s98 = scalar_select %p95, %s96, %s97
      %p101 = pneg %p95
      %p102 = scmp.eq.s32.totalorder %s16, 1
      %p103 = por %p101, %p102
      %p104 = scmp.ne.s32.totalorder %s96, %s99
      %p105 = scmp.eq.s32.totalorder %s16, 0
      %p106 = por %p104, %p105
      %p107 = scmp.ne.s32.totalorder %s96, %s99
      %p108 = scmp.eq.s32.totalorder %s21, 1
      %p109 = por %p107, %p108
      %p110 = scmp.ne.s32.totalorder %s99, %s100
      %p111 = scmp.eq.s32.totalorder %s21, 0
      %p112 = por %p110, %p111
      %p113 = scmp.ne.s32.totalorder %s99, %s100
      %p114 = scmp.eq.s32.totalorder %s22, 1
      %p115 = por %p113, %p114
      %p117 = scmp.ne.s32.totalorder %s100, %s116
      %p118 = scmp.eq.s32.totalorder %s22, 0
      %p119 = por %p117, %p118
      %s120 = sadd.s32 %s23, %s24
      %s121 = sadd.s32 %s35, %s31
      %s122 = ssub.s32 %s120, %s121
      %p123 = scmp.eq.s32.totalorder %s122, 0
      %s125 = sadd.s32 %s124, 1
      %s126 = scalar_select %p123, %s124, %s125
      %p129 = pneg %p123
      %p130 = scmp.eq.s32.totalorder %s16, 1
      %p131 = por %p129, %p130
      %p132 = scmp.ne.s32.totalorder %s124, %s127
      %p133 = scmp.eq.s32.totalorder %s16, 0
      %p134 = por %p132, %p133
      %p135 = scmp.ne.s32.totalorder %s124, %s127
      %p136 = scmp.eq.s32.totalorder %s21, 1
      %p137 = por %p135, %p136
      %p138 = scmp.ne.s32.totalorder %s127, %s128
      %p139 = scmp.eq.s32.totalorder %s21, 0
      %p140 = por %p138, %p139
      %p141 = scmp.ne.s32.totalorder %s127, %s128
      %p142 = scmp.eq.s32.totalorder %s22, 1
      %p143 = por %p141, %p142
      %p145 = scmp.ne.s32.totalorder %s128, %s144
      %p146 = scmp.eq.s32.totalorder %s22, 0
      %p147 = por %p145, %p146
      %p148 = scmp.le.s32.totalorder 1, %s16
      %p149 = scmp.lt.s32.totalorder %s16, 3
      %p150 = pnand %p148, %p149
      %p151 = pneg %p150
      // Predicated region
      $region9: #{tpu_custom_call.1} parent=5 // pred_check
        _
      $region10: #{tpu_custom_call.1} parent=5 // pred_check_branch
        %153 = sbr.rel (%p150) target = $region12
      $region11: #{tpu_custom_call.1} parent=5 // pred_region
        %s154 = ssub.s32 %s16, 1
      $region12: #{tpu_custom_call.1} parent=5 // pred_fallthru
        _
      %p155 = scmp.lt.s32.totalorder %s16, 2
      // Predicated region
      $region13: #{tpu_custom_call.1} parent=5 // pred_check
        %p156 = pneg %p155
      $region14: #{tpu_custom_call.1} parent=5 // pred_check_branch
        %158 = sbr.rel (%p156) target = $region16
      $region15: #{tpu_custom_call.1} parent=5 // pred_region
        // Predicated region
        $region17: #{tpu_custom_call.1} parent=15 // pred_check
          %p159 = pneg %p50
        $region18: #{tpu_custom_call.1} parent=15 // pred_check_branch
          %161 = sbr.rel (%p159) target = $region20
        $region19: #{tpu_custom_call.1} parent=15 // pred_region
          %s162 = sand.u32 %s40, 1
          %s163 = scalar_lea.sflag [#allocation3], %s162
          %s164 = sand.u32 %s40, 1
          %s165 = smul.addr %s164, 8
          %s166 = scalar_lea.vmem [#allocation2], %s165
          %s167 = smul.u32 2, %s24
          %s169 = ssub.s32 128, 128
          %170 = vsyncadd %s163, %s169
          %s171 = smul.addr %s23, 2
          %s172 = sadd.s32 %s167, %s171
          %s173 = smul.addr %s172, 64
          %s174 = scalar_lea.hbm %s0, %s173
          %s176 = sshll.u32 %s166, 4
          %s177 = int_to_ptr.vmem [resolvable:$true] %s176
          %179 = dma.hbm_to_vmem [thread:$0]  %s174, 128, %s177, %s163
        $region20: #{tpu_custom_call.1} parent=15 // pred_fallthru
          _
        // Predicated region
        $region21: #{tpu_custom_call.1} parent=15 // pred_check
          %p180 = pneg %p78
        $region22: #{tpu_custom_call.1} parent=15 // pred_check_branch
          %182 = sbr.rel (%p180) target = $region24
        $region23: #{tpu_custom_call.1} parent=15 // pred_region
          %s183 = sand.u32 %s68, 1
          %s184 = scalar_lea.sflag [#allocation5], %s183
          %s185 = sand.u32 %s68, 1
          %s186 = smul.addr %s185, 2
          %s187 = scalar_lea.vmem [#allocation4], %s186
          %s188 = smul.u32 2, %s24
          %s190 = ssub.s32 32, 32
          %191 = vsyncadd %s184, %s190
          %s192 = smul.addr %s23, 2
          %s193 = sadd.s32 %s188, %s192
          %s194 = smul.addr %s193, 16
          %s195 = scalar_lea.hbm %s1, %s194
          %s197 = sshll.u32 %s187, 4
          %s198 = int_to_ptr.vmem [resolvable:$true] %s197
          %200 = dma.hbm_to_vmem [thread:$0]  %s195, 32, %s198, %s184
        $region24: #{tpu_custom_call.1} parent=15 // pred_fallthru
          _
      $region16: #{tpu_custom_call.1} parent=5 // pred_fallthru
        _
      %p201 = scmp.le.s32.totalorder 1, %s16
      %p202 = scmp.lt.s32.totalorder %s16, 3
      %p203 = pnand %p201, %p202
      %p204 = pneg %p203
      // Predicated region
      $region25: #{tpu_custom_call.1} parent=5 // pred_check
        _
      $region26: #{tpu_custom_call.1} parent=5 // pred_check_branch
        %206 = sbr.rel (%p203) target = $region28
      $region27: #{tpu_custom_call.1} parent=5 // pred_region
        %s207 = ssub.s32 %s16, 1
        %s208 = sand.u32 %s43, 1
        %s209 = scalar_lea.sflag [#allocation3], %s208
        %s210 = sand.u32 %s43, 1
        %s211 = smul.addr %s210, 8
        %s212 = scalar_lea.vmem [#allocation2], %s211
        // Predicated region
        $region29: #{tpu_custom_call.1} parent=27 // pred_check
          %p213 = pneg %p56
        $region30: #{tpu_custom_call.1} parent=27 // pred_check_branch
          %215 = sbr.rel (%p213) target = $region32
        $region31: #{tpu_custom_call.1} parent=27 // pred_region
          %216 = dma.done %s209, 128
        $region32: #{tpu_custom_call.1} parent=27 // pred_fallthru
          _
        %s217 = sand.u32 %s71, 1
        %s218 = scalar_lea.sflag [#allocation5], %s217
        %s219 = sand.u32 %s71, 1
        %s220 = smul.addr %s219, 2
        %s221 = scalar_lea.vmem [#allocation4], %s220
        // Predicated region
        $region33: #{tpu_custom_call.1} parent=27 // pred_check
          %p222 = pneg %p84
        $region34: #{tpu_custom_call.1} parent=27 // pred_check_branch
          %224 = sbr.rel (%p222) target = $region36
        $region35: #{tpu_custom_call.1} parent=27 // pred_region
          %225 = dma.done %s218, 32
        $region36: #{tpu_custom_call.1} parent=27 // pred_fallthru
          _
        %s226 = sand.u32 %s43, 1
        %s227 = scalar_lea.sflag [#allocation3], %s226
        %s228 = sand.u32 %s43, 1
        %s229 = smul.addr %s228, 8
        %s230 = scalar_lea.vmem [#allocation2], %s229
        %p231 = pneg %p56
        %p232 = pneg %p53
        %s233 = sand.u32 %s71, 1
        %s234 = scalar_lea.sflag [#allocation5], %s233
        %s235 = sand.u32 %s71, 1
        %s236 = smul.addr %s235, 2
        %s237 = scalar_lea.vmem [#allocation4], %s236
        %p238 = pneg %p84
        %p239 = pneg %p81
        %p240 = pneg %p112
        %p241 = pneg %p109
        %s242 = sadd.s32 %s25, %s26
        %p243 = scmp.lt.s32.totalorder %s242, 1
        %s244 = scalar_select %p243, %s242, 1
        %s245 = scalar_lea.vmem %s2, %s244
        %p246 = pneg %p140
        %p247 = pneg %p137
        %s248 = sadd.s32 %s25, %s26
        %p249 = scmp.lt.s32.totalorder %s248, 1
        %s250 = scalar_select %p249, %s248, 1
        %s251 = scalar_lea.vmem %s3, %s250
        %s252 = smul.u32 2, %s26
        %s253 = smul.u32 2, %s26
        %s254 = sadd.s32 %s25, %s26
        %p255 = scmp.lt.s32.totalorder %s254, 1
        %s256 = scalar_select %p255, %s254, 1
        %s257 = scalar_lea.vmem %s2, %s256
        %s258 = sadd.s32 %s25, %s26
        %s259 = sadd.s32 %s25, %s26
        %p260 = scmp.lt.s32.totalorder %s259, 1
        %s261 = scalar_select %p260, %s259, 1
        %s262 = scalar_lea.vmem %s3, %s261
        %s263 = sadd.s32 %s25, %s26
        %v264 = vld [vmem:[%s212] sm:$0xff]
        %v265 = vld [vmem:[%s221] sm:$0x3]
        %v267 = vrot.slane %v264, 5
        %v268 = vrot.slane %v267, 4
        %v270 = vmax.f32 %v264, %v268
        %v271 = vrot.slane %v264, 6
        %v272 = vrot.slane %v271, 4
        %v274 = vmax.f32 %v270, %v272
        %v275 = vrot.slane %v264, 7
        %v276 = vrot.slane %v275, 4
        %v278 = vmax.f32 %v274, %v276
        %v279 = vsub.f32 %v264, %v278
        %v280 = vmul.f32 %v279, 1.442695
        %v281 = vpow.pop %v280
        %v282 = vadd.f32 %v281, 0.0
        %vm283 = vcmp.eq.s32.totalorder %v265, 0
        %v285 = vunpack.c.l.s4 1966171168
        %v286 = vunpack.c.0.s8 %v285
        %v287 = vlaneseq
        %v288 = vshrl.u32 %v287, 7
        %v289 = vsub.s32 %v286, %v288
        %v290 = vrot.slane %v264, %v289
        %v292 = vunpack.c.l.s4 1966171168
        %v293 = vunpack.c.0.s8 %v292
        %v294 = vlaneseq
        %v295 = vshrl.u32 %v294, 7
        %v296 = vsub.s32 %v293, %v295
        %v297 = vrot.slane %v290, %v296
        %v299 = vsel %vm283, %v297, 0.0
        %v301 = vrot.slane %v278, 7
        %v303 = vsub.f32 %v264, %v301
        %v304 = vmul.f32 %v303, 1.442695
        %v305 = vpow.pop %v304
        %v307 = vrot.slane %v305, 5
        %v308 = vrot.slane %v307, 4
        %v310 = vadd.f32 %v282, %v308
        %vm311 = vcmp.eq.s32.totalorder %v265, 1
        %v312 = vcombine.high %v290, %v290
        %v314 = vunpack.c.l.s4 1966171168
        %v315 = vunpack.c.0.s8 %v314
        %v316 = vlaneseq
        %v317 = vshrl.u32 %v316, 7
        %v318 = vsub.s32 %v315, %v317
        %v319 = vrot.slane %v312, %v318
        %v321 = vsel %vm311, %v319, %v299
        %v322 = vrot.slane %v278, 6
        %v324 = vsub.f32 %v264, %v322
        %v325 = vmul.f32 %v324, 1.442695
        %v326 = vpow.pop %v325
        %v328 = vrot.slane %v326, 6
        %v329 = vrot.slane %v328, 4
        %v331 = vadd.f32 %v310, %v329
        %vm332 = vcmp.eq.s32.totalorder %v265, 2
        %v333 = vcombine.high %v297, %v297
        %v335 = vsel %vm332, %v333, %v321
        %v336 = vrot.slane %v278, 5
        %v338 = vsub.f32 %v264, %v336
        %v339 = vmul.f32 %v338, 1.442695
        %v340 = vpow.pop %v339
        %v342 = vrot.slane %v340, 7
        %v343 = vrot.slane %v342, 4
        %v345 = vadd.f32 %v331, %v343
        %vm346 = vcmp.eq.s32.totalorder %v265, 3
        %v347 = vcombine.high %v319, %v319
        %v349 = vsel %vm346, %v347, %v335
        %vm350 = vcmp.ne.s32.totalorder %v265, 4294967196
        %v353 = vunpack.c.l.s4 286326784
        %v354 = vunpack.c.0.s8 %v353
        %v355 = vlaneseq
        %v356 = vshrl.u32 %v355, 7
        %v357 = vsub.s32 %v354, %v356
        %v358 = vrot.slane %v349, %v357
        %v360 = vsub.f32 %v278, %v358
        %v361 = vlog2.pop %v345
        %v362 = vmul.f32 %v361, 0.6931472
        %v363 = vadd.f32 %v360, %v362
        %v366 = vunpack.c.l.s4 1966171168
        %v367 = vunpack.c.0.s8 %v366
        %v368 = vlaneseq
        %v369 = vshrl.u32 %v368, 7
        %v370 = vsub.s32 %v367, %v369
        %v371 = vrot.slane %v363, %v370
        %v373 = vunpack.c.l.s4 1966171168
        %v374 = vunpack.c.0.s8 %v373
        %v375 = vlaneseq
        %v376 = vshrl.u32 %v375, 7
        %v377 = vsub.s32 %v374, %v376
        %v378 = vrot.slane %v371, %v377
        %v380 = vsel %vm350, %v378, 0.0
        %v382 = vlaneseq
        %v383 = vshrl.u32 %v382, 7
        %v384 = vsub.s32 0, %v383
        %v385 = vrot.slane %v380, %v384
        %v386 = vlaneseq
        %v387 = vshrl.u32 %v386, 7
        %v388 = vsub.s32 1, %v387
        %v389 = vrot.slane %v380, %v388
        %vm392 = vcmask 1040384
        %v393 = vsel %vm392, %v385, 0.0
        %v394 = vsel %vm392, %v389, 0.0
        %v395 = vadd.f32 %v393, %v394
        %396 = vadd.xlane.f32.xlu0 %v395
        %v397 = vpop.xlane.xlu0 %396
        %vm398 = vcmask 0
        %399 = vst.msk [vmem:[%s257] sm:$0x1] %vm398, %v397
        %v400 = vsel %vm350, 1, 0
        %v401 = vcvt.s32.f32 %v400
        %v403 = vlaneseq
        %v404 = vshrl.u32 %v403, 7
        %v405 = vsub.s32 0, %v404
        %v406 = vrot.slane %v401, %v405
        %v407 = vlaneseq
        %v408 = vshrl.u32 %v407, 7
        %v409 = vsub.s32 1, %v408
        %v410 = vrot.slane %v401, %v409
        %v413 = vsel %vm392, %v406, 0.0
        %v414 = vsel %vm392, %v410, 0.0
        %v415 = vadd.f32 %v413, %v414
        %416 = vadd.xlane.f32.xlu0 %v415
        %v417 = vpop.xlane.xlu0 %416
        %418 = vst.msk [vmem:[%s262] sm:$0x1] %vm398, %v417
        %s419 = sadd.s32 %s25, %s26
        %p420 = scmp.lt.s32.totalorder %s419, 1
        %s421 = scalar_select %p420, %s419, 1
        %s422 = scalar_lea.vmem %s2, %s421
        %s423 = sadd.s32 %s25, %s26
        %p424 = scmp.lt.s32.totalorder %s423, 1
        %s425 = scalar_select %p424, %s423, 1
        %s426 = scalar_lea.vmem %s3, %s425
        // Predicated region
        $region37: #{tpu_custom_call.1} parent=27 // pred_check
          %p427 = pneg %p109
        $region38: #{tpu_custom_call.1} parent=27 // pred_check_branch
          %429 = sbr.rel (%p427) target = $region40
        $region39: #{tpu_custom_call.1} parent=27 // pred_region
          %s430 = sadd.s32 %s25, %s26
        $region40: #{tpu_custom_call.1} parent=27 // pred_fallthru
          _
        // Predicated region
        $region41: #{tpu_custom_call.1} parent=27 // pred_check
          %p431 = pneg %p137
        $region42: #{tpu_custom_call.1} parent=27 // pred_check_branch
          %433 = sbr.rel (%p431) target = $region44
        $region43: #{tpu_custom_call.1} parent=27 // pred_region
          %s434 = sadd.s32 %s25, %s26
        $region44: #{tpu_custom_call.1} parent=27 // pred_fallthru
          _
      $region28: #{tpu_custom_call.1} parent=5 // pred_fallthru
        _
      %p435 = scmp.le.s32.totalorder 2, %s16
      // Predicated region
      $region45: #{tpu_custom_call.1} parent=5 // pred_check
        %p436 = pneg %p435
      $region46: #{tpu_custom_call.1} parent=5 // pred_check_branch
        %438 = sbr.rel (%p436) target = $region48
      $region47: #{tpu_custom_call.1} parent=5 // pred_region
        %s439 = ssub.s32 %s16, 2
        // Predicated region
        $region49: #{tpu_custom_call.1} parent=47 // pred_check
          %p440 = pneg %p115
        $region50: #{tpu_custom_call.1} parent=47 // pred_check_branch
          %442 = sbr.rel (%p440) target = $region52
        $region51: #{tpu_custom_call.1} parent=47 // pred_region
          %s443 = sadd.s32 %s27, %s28
          %p444 = scmp.lt.s32.totalorder %s443, 1
          %s445 = scalar_select %p444, %s443, 1
          %s446 = scalar_lea.vmem %s2, %s445
        $region52: #{tpu_custom_call.1} parent=47 // pred_fallthru
          _
        // Predicated region
        $region53: #{tpu_custom_call.1} parent=47 // pred_check
          %p447 = pneg %p143
        $region54: #{tpu_custom_call.1} parent=47 // pred_check_branch
          %449 = sbr.rel (%p447) target = $region56
        $region55: #{tpu_custom_call.1} parent=47 // pred_region
          %s450 = sadd.s32 %s27, %s28
          %p451 = scmp.lt.s32.totalorder %s450, 1
          %s452 = scalar_select %p451, %s450, 1
          %s453 = scalar_lea.vmem %s3, %s452
        $region56: #{tpu_custom_call.1} parent=47 // pred_fallthru
          _
      $region48: #{tpu_custom_call.1} parent=5 // pred_fallthru
        _
    $region6: #{tpu_custom_call.1} parent=1 // loop_footer
      %s20 = sadd.s32 1, %s16
    $region7: #{tpu_custom_call.1} parent=1 // loop_footer_branch
      %15 = sbr.rel target = $region3
    $region8: #{tpu_custom_call.1} parent=1 // loop_exit
      _
    %454 = vsyncpa [#allocation3], 1
    %s455 = scalar_lea.sflag [#allocation3], 1
    %456 = vsyncpa %s455, 1
    %457 = vsyncpa [#allocation5], 1
    %s458 = scalar_lea.sflag [#allocation5], 1
    %459 = vsyncpa %s458, 1

</llo_original>
